<compile_context>
chip_gen: v6e
topology: v6e:2x2x1
jax: 0.10.0
libtpu: 0.0.40
codegen_flags: <defaults>
</compile_context>

<pallas_src>
import functools

import jax
import jax.numpy as jnp
from jax import lax
from jax.experimental import pallas as pl
from jax.experimental.pallas import tpu as pltpu


# ----------------------------- Pallas kernels ------------------------------

def _sr_ln_kv_kernel(x_ref, srw_ref, srb_ref, g_ref, b_ref,
                     kw_ref, kb_ref, vw_ref, vb_ref, k_ref, v_ref):
    # x_ref:   (sr, Wr, sr*C)  one reduced image row worth of input pixels
    # srw_ref: (sr, sr*C, C)   bf16 conv weight, row kh, flattened (kw, ci)
    # srb/g/b: (1, C) f32      conv bias / LayerNorm gamma / beta
    # kw/vw:   (nh, C, hd) bf16, kb/vb: (nh, 1, hd) f32
    # k_ref/v_ref: (nh, Wr, hd) bf16
    sr = x_ref.shape[0]
    nh = kw_ref.shape[0]
    Wr = x_ref.shape[1]
    C = srw_ref.shape[2]

    # sr x sr strided conv as sr accumulated matmuls (bf16 MXU, f32 acc).
    acc = jnp.zeros((Wr, C), jnp.float32)
    for kh in range(sr):                                   # small static unroll
        acc += jnp.dot(x_ref[kh].astype(jnp.bfloat16), srw_ref[kh],
                       preferred_element_type=jnp.float32)
    xr = acc + srb_ref[...]

    # LayerNorm over channels.
    mu = jnp.mean(xr, axis=-1, keepdims=True)
    var = jnp.mean(jnp.square(xr - mu), axis=-1, keepdims=True)
    xn = (xr - mu) * lax.rsqrt(var + 1e-5)
    xn = xn * g_ref[...] + b_ref[...]
    xb = xn.astype(jnp.bfloat16)

    # Per-head k / v projections, written head-major (lane-dense hd blocks).
    for h in range(nh):                                    # small static unroll
        k_ref[h] = (jnp.dot(xb, kw_ref[h], preferred_element_type=jnp.float32)
                    + kb_ref[h]).astype(k_ref.dtype)
        v_ref[h] = (jnp.dot(xb, vw_ref[h], preferred_element_type=jnp.float32)
                    + vb_ref[h]).astype(v_ref.dtype)


def sr_ln_kv(x, H, W, sr_w, sr_b, ln_g, ln_b, kw_h, kb_h, vw_h, vb_h, *, sr):
    B, N, C = x.shape
    assert H % sr == 0 and W % sr == 0 and N == H * W
    HR, Wr = H // sr, W // sr
    nh, _, hd = kw_h.shape
    # Zero-copy view: (B, N, C) -> (B, HR, sr, Wr, sr*C); contiguous split/merge.
    xv = x.reshape(B, HR, sr, Wr, sr * C)
    k, v = pl.pallas_call(
        _sr_ln_kv_kernel,
        out_shape=(jax.ShapeDtypeStruct((B, nh, HR, Wr, hd), jnp.bfloat16),
                   jax.ShapeDtypeStruct((B, nh, HR, Wr, hd), jnp.bfloat16)),
        grid=(B, HR),
        in_specs=[
            pl.BlockSpec((None, None, sr, Wr, sr * C),
                         lambda b, r: (b, r, 0, 0, 0)),
            pl.BlockSpec((sr, sr * C, C), lambda b, r: (0, 0, 0)),
            pl.BlockSpec((1, C), lambda b, r: (0, 0)),
            pl.BlockSpec((1, C), lambda b, r: (0, 0)),
            pl.BlockSpec((1, C), lambda b, r: (0, 0)),
            pl.BlockSpec((nh, C, hd), lambda b, r: (0, 0, 0)),
            pl.BlockSpec((nh, 1, hd), lambda b, r: (0, 0, 0)),
            pl.BlockSpec((nh, C, hd), lambda b, r: (0, 0, 0)),
            pl.BlockSpec((nh, 1, hd), lambda b, r: (0, 0, 0)),
        ],
        out_specs=(
            pl.BlockSpec((None, nh, None, Wr, hd), lambda b, r: (b, 0, r, 0, 0)),
            pl.BlockSpec((None, nh, None, Wr, hd), lambda b, r: (b, 0, r, 0, 0)),
        ),
        compiler_params=pltpu.CompilerParams(
            dimension_semantics=("parallel", "parallel"),
            vmem_limit_bytes=32 * 1024 * 1024),
    )(xv, sr_w, sr_b.reshape(1, C), ln_g.reshape(1, C), ln_b.reshape(1, C),
      kw_h, kb_h, vw_h, vb_h)
    Nk = HR * Wr
    return k.reshape(B, nh, Nk, hd), v.reshape(B, nh, Nk, hd)


def _kv_linear_kernel(x_ref, kw_ref, kb_ref, vw_ref, vb_ref, k_ref, v_ref):
    # x_ref: (TM, C); kw/vw: (nh, C, hd) bf16; kb/vb: (nh, 1, hd) f32
    nh = kw_ref.shape[0]
    xb = x_ref[...].astype(jnp.bfloat16)
    for h in range(nh):
        k_ref[h] = (jnp.dot(xb, kw_ref[h], preferred_element_type=jnp.float32)
                    + kb_ref[h]).astype(k_ref.dtype)
        v_ref[h] = (jnp.dot(xb, vw_ref[h], preferred_element_type=jnp.float32)
                    + vb_ref[h]).astype(v_ref.dtype)


def kv_linear(x, kw_h, kb_h, vw_h, vb_h, *, tm=512):
    B, N, C = x.shape
    nh, _, hd = kw_h.shape
    TM = N if N <= tm else tm
    nt = pl.cdiv(N, TM)
    k, v = pl.pallas_call(
        _kv_linear_kernel,
        out_shape=(jax.ShapeDtypeStruct((B, nh, N, hd), jnp.bfloat16),
                   jax.ShapeDtypeStruct((B, nh, N, hd), jnp.bfloat16)),
        grid=(B, nt),
        in_specs=[
            pl.BlockSpec((None, TM, C), lambda b, i: (b, i, 0)),
            pl.BlockSpec((nh, C, hd), lambda b, i: (0, 0, 0)),
            pl.BlockSpec((nh, 1, hd), lambda b, i: (0, 0, 0)),
            pl.BlockSpec((nh, C, hd), lambda b, i: (0, 0, 0)),
            pl.BlockSpec((nh, 1, hd), lambda b, i: (0, 0, 0)),
        ],
        out_specs=(
            pl.BlockSpec((None, nh, TM, hd), lambda b, i: (b, 0, i, 0)),
            pl.BlockSpec((None, nh, TM, hd), lambda b, i: (b, 0, i, 0)),
        ),
        compiler_params=pltpu.CompilerParams(
            dimension_semantics=("parallel", "parallel"),
            vmem_limit_bytes=32 * 1024 * 1024),
    )(x, kw_h, kb_h, vw_h, vb_h)
    return k, v


def _attn_kernel(x_ref, k_ref, v_ref, qw_ref, qb_ref, pw_ref, pb_ref,
                 o_ref, acc_ref, *, scale):
    # x: (TQ, C) f32   k/v: (Nk, hd) bf16   qw: (C, hd) bf16  qb: (1, hd) f32
    # pw: (hd, C) bf16  pb: (1, C) f32      o: (TQ, C)   acc: (TQ, C) f32
    h = pl.program_id(2)
    nh = pl.num_programs(2)

    @pl.when(h == 0)
    def _():
        acc_ref[...] = jnp.zeros_like(acc_ref)

    xb = x_ref[...].astype(jnp.bfloat16)
    # Per-head q projection; softmax scale applied here (free VPU multiply).
    q = (jnp.dot(xb, qw_ref[...], preferred_element_type=jnp.float32)
         + qb_ref[...]) * scale                                   # (TQ, hd) f32

    k = k_ref[...]                                                # (Nk, hd) bf16
    v = v_ref[...]                                                # (Nk, hd) bf16

    # q @ k^T without materializing a transpose of k (contract on hd).
    s = lax.dot_general(q.astype(jnp.bfloat16), k, (((1,), (1,)), ((), ())),
                        preferred_element_type=jnp.float32)       # (TQ, Nk)
    m = jnp.max(s, axis=-1, keepdims=True)
    p = jnp.exp(s - m)
    denom = jnp.sum(p, axis=-1, keepdims=True)
    # NOTE: approx reciprocal (EUP) -> ~1e-3 rel. error vs exact divide.
    p = p * pl.reciprocal(denom, approx=True)

    o_h = jnp.dot(p.astype(jnp.bfloat16), v,
                  preferred_element_type=jnp.float32)             # (TQ, hd)
    # This head's slice of the output projection, accumulated in f32.
    acc_ref[...] += jnp.dot(o_h.astype(jnp.bfloat16), pw_ref[...],
                            preferred_element_type=jnp.float32)   # (TQ, C)

    @pl.when(h == nh - 1)
    def _():
        o_ref[...] = (acc_ref[...] + pb_ref[...]).astype(o_ref.dtype)


def attention(x, k_heads, v_heads, qw_h, qb_h, pw_h, pb, *, scale, tq=512):
    B, N, C = x.shape
    _, nh, Nk, hd = k_heads.shape
    TQ = N if N <= tq else tq
    nq = pl.cdiv(N, TQ)
    flops = 4 * B * N * C * C + 4 * B * N * Nk * C
    trans = B * nh * N * Nk
    bytes_acc = (4 * B * N * C + 2 * 2 * B * nh * Nk * hd
                 + 4 * B * N * C + 2 * 3 * C * C)
    return pl.pallas_call(
        functools.partial(_attn_kernel, scale=scale),
        out_shape=jax.ShapeDtypeStruct((B, N, C), x.dtype),
        grid=(B, nq, nh),
        in_specs=[
            pl.BlockSpec((None, TQ, C), lambda b, i, h: (b, i, 0)),
            pl.BlockSpec((None, None, Nk, hd), lambda b, i, h: (b, h, 0, 0)),
            pl.BlockSpec((None, None, Nk, hd), lambda b, i, h: (b, h, 0, 0)),
            pl.BlockSpec((None, C, hd), lambda b, i, h: (h, 0, 0)),
            pl.BlockSpec((None, 1, hd), lambda b, i, h: (h, 0, 0)),
            pl.BlockSpec((None, hd, C), lambda b, i, h: (h, 0, 0)),
            pl.BlockSpec((1, C), lambda b, i, h: (0, 0)),
        ],
        out_specs=pl.BlockSpec((None, TQ, C), lambda b, i, h: (b, i, 0)),
        scratch_shapes=[pltpu.VMEM((TQ, C), jnp.float32)],
        compiler_params=pltpu.CompilerParams(
            dimension_semantics=("parallel", "parallel", "arbitrary"),
            vmem_limit_bytes=32 * 1024 * 1024),
        cost_estimate=pl.CostEstimate(flops=flops, transcendentals=trans,
                                      bytes_accessed=bytes_acc),
    )(x, k_heads, v_heads, qw_h, qb_h, pw_h, pb)


# --------------------------- parameter preparation --------------------------
# One-time layout prep (would be done once per checkpoint load in a real model):
#   * weights stored (in_features, out_features), split per head, cast to bf16.
#   * Conv2d weight (C_out, C_in, kh, kw) -> (kh, kw*C_in, C_out) to match the
#     kernel's zero-copy (kw, ci) patch-column order.

def prepare_params(p, *, num_heads, sr_ratio):
    C = p["q_w"].shape[0]
    hd = C // num_heads
    bf = jnp.bfloat16
    prep = {
        "qw_h": jnp.transpose(p["q_w"].reshape(C, num_heads, hd),
                              (1, 0, 2)).astype(bf),
        "qb_h": p["q_b"].reshape(num_heads, 1, hd),
        "pw_h": p["proj_w"].reshape(num_heads, hd, C).astype(bf),
        "proj_b": p["proj_b"].reshape(1, C),
    }
    kvw = p["kv_w"].reshape(C, 2, num_heads, hd)
    prep["kw_h"] = jnp.transpose(kvw[:, 0], (1, 0, 2)).astype(bf)
    prep["vw_h"] = jnp.transpose(kvw[:, 1], (1, 0, 2)).astype(bf)
    kvb = p["kv_b"].reshape(2, num_heads, 1, hd)
    prep["kb_h"] = kvb[0]
    prep["vb_h"] = kvb[1]
    if sr_ratio > 1:
        sr = sr_ratio
        prep["sr_w"] = jnp.transpose(p["sr_conv_w"],
                                     (2, 3, 1, 0)).reshape(sr, sr * C, C).astype(bf)
        prep["sr_b"] = p["sr_b"]
        prep["ln_g"] = p["ln_g"]
        prep["ln_b"] = p["ln_b"]
    return prep


# ----------------------------- module forward ------------------------------

def pvt_attention_forward(x, H, W, prep, *, num_heads, sr_ratio):
    B, N, C = x.shape
    assert C % num_heads == 0
    hd = C // num_heads
    scale = hd ** (-0.5)

    if sr_ratio > 1:
        k, v = sr_ln_kv(x, H, W, prep["sr_w"], prep["sr_b"],
                        prep["ln_g"], prep["ln_b"],
                        prep["kw_h"], prep["kb_h"], prep["vw_h"], prep["vb_h"],
                        sr=sr_ratio)
    else:
        k, v = kv_linear(x, prep["kw_h"], prep["kb_h"],
                         prep["vw_h"], prep["vb_h"])

    return attention(x, k, v, prep["qw_h"], prep["qb_h"],
                     prep["pw_h"], prep["proj_b"], scale=scale)


# ----------------------------- pure-JAX reference --------------------------

def reference_forward(x, H, W, p, *, num_heads, sr_ratio):
    B, N, C = x.shape
    hd = C // num_heads
    scale = hd ** (-0.5)
    q = (x @ p["q_w"] + p["q_b"]).reshape(B, N, num_heads, hd).transpose(0, 2, 1, 3)
    if sr_ratio > 1:
        x_img = x.reshape(B, H, W, C).transpose(0, 3, 1, 2)          # NCHW
        xr = lax.conv_general_dilated(
            x_img, p["sr_conv_w"], (sr_ratio, sr_ratio), "VALID",
            dimension_numbers=("NCHW", "OIHW", "NCHW"))
        xr = xr + p["sr_b"].reshape(1, C, 1, 1)
        x_ = xr.reshape(B, C, -1).transpose(0, 2, 1)
        mu = x_.mean(-1, keepdims=True)
        var = ((x_ - mu) ** 2).mean(-1, keepdims=True)
        x_ = (x_ - mu) / jnp.sqrt(var + 1e-5) * p["ln_g"] + p["ln_b"]
    else:
        x_ = x
    Nk = x_.shape[1]
    kv = (x_ @ p["kv_w"] + p["kv_b"]).reshape(B, Nk, 2, num_heads, hd)
    kv = kv.transpose(2, 0, 3, 1, 4)
    k, v = kv[0], kv[1]
    attn = jax.nn.softmax((q @ jnp.swapaxes(k, -2, -1)) * scale, axis=-1)
    out = (attn @ v).transpose(0, 2, 1, 3).reshape(B, N, C)
    return out @ p["proj_w"] + p["proj_b"]


# --------------------------------- main -------------------------------------

if __name__ == "__main__":
    B, C, H, W = 2, 32, 8, 8
    num_heads = 2
    N = H * W
    sr_conv = 2

    key = jax.random.PRNGKey(0)
    keys = jax.random.split(key, 8)
    ws = 0.05
    params = {
        # q / kv have qkv_bias=False -> zero biases; weights stored (in, out).
        "q_w": jax.random.normal(keys[0], (C, C), jnp.float32) * ws,
        "q_b": jnp.zeros((C,), jnp.float32),
        "kv_w": jax.random.normal(keys[1], (C, 2 * C), jnp.float32) * ws,
        "kv_b": jnp.zeros((2 * C,), jnp.float32),
        # Conv2d weight in PyTorch (C_out, C_in, kh, kw) layout.
        "sr_conv_w": jax.random.normal(keys[2], (C, C, sr_conv, sr_conv),
                                       jnp.float32) * ws,
        "sr_b": jax.random.normal(keys[3], (C,), jnp.float32) * ws,
        "ln_g": jnp.ones((C,), jnp.float32),
        "ln_b": jnp.zeros((C,), jnp.float32),
        "proj_w": jax.random.normal(keys[4], (C, C), jnp.float32) * ws,
        "proj_b": jax.random.normal(keys[5], (C,), jnp.float32) * ws,
    }
    x = jax.random.normal(keys[6], (B, N, C), jnp.float32)

    # Exercise both the spatial-reduction (sr_ratio=2) and plain (sr_ratio=1) paths.
    for sr_ratio in (2, 1):
        prep = prepare_params(params, num_heads=num_heads, sr_ratio=sr_ratio)
        out = pvt_attention_forward(x, H, W, prep,
                                    num_heads=num_heads, sr_ratio=sr_ratio)
        out = jax.block_until_ready(out)
        ref = reference_forward(x, H, W, params,
                                num_heads=num_heads, sr_ratio=sr_ratio)
        assert out.shape == (B, N, C)
        err = float(jnp.max(jnp.abs(out - ref)))
        assert jnp.allclose(out, ref, atol=2e-2, rtol=2e-2), \
            f"mismatch vs reference (sr_ratio={sr_ratio}), max abs err {err}"

    print("KERNEL_OK")
</pallas_src>

<mosaic_0001>
module attributes {stable_mosaic.version = 11 : i64} {
  func.func @_sr_ln_kv_kernel(%arg0: i32, %arg1: i32, %arg2: memref<1x1x2x4x64xf32, #tpu.memory_space<vmem>>, %arg3: memref<2x64x32xbf16, #tpu.memory_space<vmem>>, %arg4: memref<1x32xf32, #tpu.memory_space<vmem>>, %arg5: memref<1x32xf32, #tpu.memory_space<vmem>>, %arg6: memref<1x32xf32, #tpu.memory_space<vmem>>, %arg7: memref<2x32x16xbf16, #tpu.memory_space<vmem>>, %arg8: memref<2x1x16xf32, #tpu.memory_space<vmem>>, %arg9: memref<2x32x16xbf16, #tpu.memory_space<vmem>>, %arg10: memref<2x1x16xf32, #tpu.memory_space<vmem>>, %arg11: memref<1x2x1x4x16xbf16, #tpu.memory_space<vmem>>, %arg12: memref<1x2x1x4x16xbf16, #tpu.memory_space<vmem>>) attributes {dimension_semantics = [#tpu.dimension_semantics<parallel>, #tpu.dimension_semantics<parallel>], iteration_bounds = array<i64: 2, 4>, scalar_prefetch = 0 : i64, scratch_operands = 0 : i64, tpu.core_type = #tpu.core_type<tc>, window_params = [{transform_indices = @transform_0, window_bounds = array<i64: 1, 1, 2, 4, 64>}, {pipeline_mode = #tpu.pipeline_mode<synchronous>, transform_indices = @transform_1, window_bounds = array<i64: 2, 64, 32>}, {pipeline_mode = #tpu.pipeline_mode<synchronous>, transform_indices = @transform_2, window_bounds = array<i64: 1, 32>}, {pipeline_mode = #tpu.pipeline_mode<synchronous>, transform_indices = @transform_3, window_bounds = array<i64: 1, 32>}, {pipeline_mode = #tpu.pipeline_mode<synchronous>, transform_indices = @transform_4, window_bounds = array<i64: 1, 32>}, {pipeline_mode = #tpu.pipeline_mode<synchronous>, transform_indices = @transform_5, window_bounds = array<i64: 2, 32, 16>}, {pipeline_mode = #tpu.pipeline_mode<synchronous>, transform_indices = @transform_6, window_bounds = array<i64: 2, 1, 16>}, {pipeline_mode = #tpu.pipeline_mode<synchronous>, transform_indices = @transform_7, window_bounds = array<i64: 2, 32, 16>}, {pipeline_mode = #tpu.pipeline_mode<synchronous>, transform_indices = @transform_8, window_bounds = array<i64: 2, 1, 16>}, {transform_indices = @transform_9, window_bounds = array<i64: 1, 2, 1, 4, 16>}, {transform_indices = @transform_10, window_bounds = array<i64: 1, 2, 1, 4, 16>}]} {
    %cst = arith.constant 0.000000e+00 : f32
    %0 = vector.broadcast %cst : f32 to vector<4x32xf32>
    %c0 = arith.constant 0 : index
    %c0_0 = arith.constant 0 : index
    %c0_1 = arith.constant 0 : index
    %c0_2 = arith.constant 0 : index
    %c0_3 = arith.constant 0 : index
    %1 = vector.load %arg2[%c0, %c0_0, %c0_1, %c0_2, %c0_3] : memref<1x1x2x4x64xf32, #tpu.memory_space<vmem>>, vector<1x1x1x4x64xf32>
    %2 = vector.shape_cast %1 : vector<1x1x1x4x64xf32> to vector<4x64xf32>
    %3 = arith.truncf %2 : vector<4x64xf32> to vector<4x64xbf16>
    %c0_4 = arith.constant 0 : index
    %c0_5 = arith.constant 0 : index
    %c0_6 = arith.constant 0 : index
    %4 = vector.load %arg3[%c0_4, %c0_5, %c0_6] : memref<2x64x32xbf16, #tpu.memory_space<vmem>>, vector<1x64x32xbf16>
    %5 = vector.shape_cast %4 : vector<1x64x32xbf16> to vector<64x32xbf16>
    %cst_7 = arith.constant dense<0.000000e+00> : vector<4x32xf32>
    %6 = tpu.matmul %3, %5, %cst_7 {dimension_numbers = #tpu.dot_dimension_numbers<[1], [0], [0], [1], [0, 0, 1, 1], [], []>} : vector<4x64xbf16>, vector<64x32xbf16>, vector<4x32xf32> -> vector<4x32xf32>
    %7 = arith.addf %0, %6 : vector<4x32xf32>
    %c0_8 = arith.constant 0 : index
    %c0_9 = arith.constant 0 : index
    %c1 = arith.constant 1 : index
    %c0_10 = arith.constant 0 : index
    %c0_11 = arith.constant 0 : index
    %8 = vector.load %arg2[%c0_8, %c0_9, %c1, %c0_10, %c0_11] : memref<1x1x2x4x64xf32, #tpu.memory_space<vmem>>, vector<1x1x1x4x64xf32>
    %9 = vector.shape_cast %8 : vector<1x1x1x4x64xf32> to vector<4x64xf32>
    %10 = arith.truncf %9 : vector<4x64xf32> to vector<4x64xbf16>
    %c1_12 = arith.constant 1 : index
    %c0_13 = arith.constant 0 : index
    %c0_14 = arith.constant 0 : index
    %11 = vector.load %arg3[%c1_12, %c0_13, %c0_14] : memref<2x64x32xbf16, #tpu.memory_space<vmem>>, vector<1x64x32xbf16>
    %12 = vector.shape_cast %11 : vector<1x64x32xbf16> to vector<64x32xbf16>
    %cst_15 = arith.constant dense<0.000000e+00> : vector<4x32xf32>
    %13 = tpu.matmul %10, %12, %cst_15 {dimension_numbers = #tpu.dot_dimension_numbers<[1], [0], [0], [1], [0, 0, 1, 1], [], []>} : vector<4x64xbf16>, vector<64x32xbf16>, vector<4x32xf32> -> vector<4x32xf32>
    %14 = arith.addf %7, %13 : vector<4x32xf32>
    %c0_16 = arith.constant 0 : index
    %c0_17 = arith.constant 0 : index
    %15 = vector.load %arg4[%c0_16, %c0_17] : memref<1x32xf32, #tpu.memory_space<vmem>>, vector<1x32xf32>
    %16 = vector.broadcast %15 : vector<1x32xf32> to vector<4x32xf32>
    %17 = arith.addf %14, %16 : vector<4x32xf32>
    %cst_18 = arith.constant dense<0.000000e+00> : vector<4xf32>
    %18 = vector.multi_reduction <add>, %17, %cst_18 [1] : vector<4x32xf32> to vector<4xf32>
    %19 = vector.shape_cast %18 : vector<4xf32> to vector<4x1xf32>
    %cst_19 = arith.constant 3.200000e+01 : f32
    %20 = vector.broadcast %cst_19 : f32 to vector<4x1xf32>
    %21 = arith.divf %19, %20 : vector<4x1xf32>
    %22 = vector.broadcast %21 : vector<4x1xf32> to vector<4x32xf32>
    %23 = arith.subf %17, %22 : vector<4x32xf32>
    %24 = arith.mulf %23, %23 : vector<4x32xf32>
    %cst_20 = arith.constant dense<0.000000e+00> : vector<4xf32>
    %25 = vector.multi_reduction <add>, %24, %cst_20 [1] : vector<4x32xf32> to vector<4xf32>
    %26 = vector.shape_cast %25 : vector<4xf32> to vector<4x1xf32>
    %cst_21 = arith.constant 3.200000e+01 : f32
    %27 = vector.broadcast %cst_21 : f32 to vector<4x1xf32>
    %28 = arith.divf %26, %27 : vector<4x1xf32>
    %29 = vector.broadcast %21 : vector<4x1xf32> to vector<4x32xf32>
    %30 = arith.subf %17, %29 : vector<4x32xf32>
    %cst_22 = arith.constant 9.99999974E-6 : f32
    %31 = vector.broadcast %cst_22 : f32 to vector<4x1xf32>
    %32 = arith.addf %28, %31 : vector<4x1xf32>
    %33 = math.rsqrt %32 : vector<4x1xf32>
    %34 = vector.broadcast %33 : vector<4x1xf32> to vector<4x32xf32>
    %35 = arith.mulf %30, %34 : vector<4x32xf32>
    %c0_23 = arith.constant 0 : index
    %c0_24 = arith.constant 0 : index
    %36 = vector.load %arg5[%c0_23, %c0_24] : memref<1x32xf32, #tpu.memory_space<vmem>>, vector<1x32xf32>
    %37 = vector.broadcast %36 : vector<1x32xf32> to vector<4x32xf32>
    %38 = arith.mulf %35, %37 : vector<4x32xf32>
    %c0_25 = arith.constant 0 : index
    %c0_26 = arith.constant 0 : index
    %39 = vector.load %arg6[%c0_25, %c0_26] : memref<1x32xf32, #tpu.memory_space<vmem>>, vector<1x32xf32>
    %40 = vector.broadcast %39 : vector<1x32xf32> to vector<4x32xf32>
    %41 = arith.addf %38, %40 : vector<4x32xf32>
    %42 = arith.truncf %41 : vector<4x32xf32> to vector<4x32xbf16>
    %c0_27 = arith.constant 0 : index
    %c0_28 = arith.constant 0 : index
    %c0_29 = arith.constant 0 : index
    %43 = vector.load %arg7[%c0_27, %c0_28, %c0_29] : memref<2x32x16xbf16, #tpu.memory_space<vmem>>, vector<1x32x16xbf16>
    %44 = vector.shape_cast %43 : vector<1x32x16xbf16> to vector<32x16xbf16>
    %cst_30 = arith.constant dense<0.000000e+00> : vector<4x16xf32>
    %45 = tpu.matmul %42, %44, %cst_30 {dimension_numbers = #tpu.dot_dimension_numbers<[1], [0], [0], [1], [0, 0, 1, 1], [], []>} : vector<4x32xbf16>, vector<32x16xbf16>, vector<4x16xf32> -> vector<4x16xf32>
    %c0_31 = arith.constant 0 : index
    %c0_32 = arith.constant 0 : index
    %c0_33 = arith.constant 0 : index
    %46 = vector.load %arg8[%c0_31, %c0_32, %c0_33] : memref<2x1x16xf32, #tpu.memory_space<vmem>>, vector<1x1x16xf32>
    %47 = vector.shape_cast %46 : vector<1x1x16xf32> to vector<1x16xf32>
    %48 = vector.broadcast %47 : vector<1x16xf32> to vector<4x16xf32>
    %49 = arith.addf %45, %48 : vector<4x16xf32>
    %50 = arith.truncf %49 : vector<4x16xf32> to vector<4x16xbf16>
    %c0_34 = arith.constant 0 : index
    %c0_35 = arith.constant 0 : index
    %c0_36 = arith.constant 0 : index
    %c0_37 = arith.constant 0 : index
    %c0_38 = arith.constant 0 : index
    %51 = vector.load %arg11[%c0_34, %c0_35, %c0_36, %c0_37, %c0_38] : memref<1x2x1x4x16xbf16, #tpu.memory_space<vmem>>, vector<1x1x1x4x16xbf16>
    %52 = vector.shape_cast %51 : vector<1x1x1x4x16xbf16> to vector<4x16xbf16>
    %53 = vector.shape_cast %50 : vector<4x16xbf16> to vector<1x1x1x4x16xbf16>
    tpu.vector_store %arg11[%c0_34, %c0_35, %c0_36, %c0_37, %c0_38], %53 {strides = array<i32>} : memref<1x2x1x4x16xbf16, #tpu.memory_space<vmem>>, vector<1x1x1x4x16xbf16>,
    %c0_39 = arith.constant 0 : index
    %c0_40 = arith.constant 0 : index
    %c0_41 = arith.constant 0 : index
    %54 = vector.load %arg9[%c0_39, %c0_40, %c0_41] : memref<2x32x16xbf16, #tpu.memory_space<vmem>>, vector<1x32x16xbf16>
    %55 = vector.shape_cast %54 : vector<1x32x16xbf16> to vector<32x16xbf16>
    %cst_42 = arith.constant dense<0.000000e+00> : vector<4x16xf32>
    %56 = tpu.matmul %42, %55, %cst_42 {dimension_numbers = #tpu.dot_dimension_numbers<[1], [0], [0], [1], [0, 0, 1, 1], [], []>} : vector<4x32xbf16>, vector<32x16xbf16>, vector<4x16xf32> -> vector<4x16xf32>
    %c0_43 = arith.constant 0 : index
    %c0_44 = arith.constant 0 : index
    %c0_45 = arith.constant 0 : index
    %57 = vector.load %arg10[%c0_43, %c0_44, %c0_45] : memref<2x1x16xf32, #tpu.memory_space<vmem>>, vector<1x1x16xf32>
    %58 = vector.shape_cast %57 : vector<1x1x16xf32> to vector<1x16xf32>
    %59 = vector.broadcast %58 : vector<1x16xf32> to vector<4x16xf32>
    %60 = arith.addf %56, %59 : vector<4x16xf32>
    %61 = arith.truncf %60 : vector<4x16xf32> to vector<4x16xbf16>
    %c0_46 = arith.constant 0 : index
    %c0_47 = arith.constant 0 : index
    %c0_48 = arith.constant 0 : index
    %c0_49 = arith.constant 0 : index
    %c0_50 = arith.constant 0 : index
    %62 = vector.load %arg12[%c0_46, %c0_47, %c0_48, %c0_49, %c0_50] : memref<1x2x1x4x16xbf16, #tpu.memory_space<vmem>>, vector<1x1x1x4x16xbf16>
    %63 = vector.shape_cast %62 : vector<1x1x1x4x16xbf16> to vector<4x16xbf16>
    %64 = vector.shape_cast %61 : vector<4x16xbf16> to vector<1x1x1x4x16xbf16>
    tpu.vector_store %arg12[%c0_46, %c0_47, %c0_48, %c0_49, %c0_50], %64 {strides = array<i32>} : memref<1x2x1x4x16xbf16, #tpu.memory_space<vmem>>, vector<1x1x1x4x16xbf16>,
    %c1_51 = arith.constant 1 : index
    %c0_52 = arith.constant 0 : index
    %c0_53 = arith.constant 0 : index
    %65 = vector.load %arg7[%c1_51, %c0_52, %c0_53] : memref<2x32x16xbf16, #tpu.memory_space<vmem>>, vector<1x32x16xbf16>
    %66 = vector.shape_cast %65 : vector<1x32x16xbf16> to vector<32x16xbf16>
    %cst_54 = arith.constant dense<0.000000e+00> : vector<4x16xf32>
    %67 = tpu.matmul %42, %66, %cst_54 {dimension_numbers = #tpu.dot_dimension_numbers<[1], [0], [0], [1], [0, 0, 1, 1], [], []>} : vector<4x32xbf16>, vector<32x16xbf16>, vector<4x16xf32> -> vector<4x16xf32>
    %c1_55 = arith.constant 1 : index
    %c0_56 = arith.constant 0 : index
    %c0_57 = arith.constant 0 : index
    %68 = vector.load %arg8[%c1_55, %c0_56, %c0_57] : memref<2x1x16xf32, #tpu.memory_space<vmem>>, vector<1x1x16xf32>
    %69 = vector.shape_cast %68 : vector<1x1x16xf32> to vector<1x16xf32>
    %70 = vector.broadcast %69 : vector<1x16xf32> to vector<4x16xf32>
    %71 = arith.addf %67, %70 : vector<4x16xf32>
    %72 = arith.truncf %71 : vector<4x16xf32> to vector<4x16xbf16>
    %c0_58 = arith.constant 0 : index
    %c1_59 = arith.constant 1 : index
    %c0_60 = arith.constant 0 : index
    %c0_61 = arith.constant 0 : index
    %c0_62 = arith.constant 0 : index
    %73 = vector.load %arg11[%c0_58, %c1_59, %c0_60, %c0_61, %c0_62] : memref<1x2x1x4x16xbf16, #tpu.memory_space<vmem>>, vector<1x1x1x4x16xbf16>
    %74 = vector.shape_cast %73 : vector<1x1x1x4x16xbf16> to vector<4x16xbf16>
    %75 = vector.shape_cast %72 : vector<4x16xbf16> to vector<1x1x1x4x16xbf16>
    tpu.vector_store %arg11[%c0_58, %c1_59, %c0_60, %c0_61, %c0_62], %75 {strides = array<i32>} : memref<1x2x1x4x16xbf16, #tpu.memory_space<vmem>>, vector<1x1x1x4x16xbf16>,
    %c1_63 = arith.constant 1 : index
    %c0_64 = arith.constant 0 : index
    %c0_65 = arith.constant 0 : index
    %76 = vector.load %arg9[%c1_63, %c0_64, %c0_65] : memref<2x32x16xbf16, #tpu.memory_space<vmem>>, vector<1x32x16xbf16>
    %77 = vector.shape_cast %76 : vector<1x32x16xbf16> to vector<32x16xbf16>
    %cst_66 = arith.constant dense<0.000000e+00> : vector<4x16xf32>
    %78 = tpu.matmul %42, %77, %cst_66 {dimension_numbers = #tpu.dot_dimension_numbers<[1], [0], [0], [1], [0, 0, 1, 1], [], []>} : vector<4x32xbf16>, vector<32x16xbf16>, vector<4x16xf32> -> vector<4x16xf32>
    %c1_67 = arith.constant 1 : index
    %c0_68 = arith.constant 0 : index
    %c0_69 = arith.constant 0 : index
    %79 = vector.load %arg10[%c1_67, %c0_68, %c0_69] : memref<2x1x16xf32, #tpu.memory_space<vmem>>, vector<1x1x16xf32>
    %80 = vector.shape_cast %79 : vector<1x1x16xf32> to vector<1x16xf32>
    %81 = vector.broadcast %80 : vector<1x16xf32> to vector<4x16xf32>
    %82 = arith.addf %78, %81 : vector<4x16xf32>
    %83 = arith.truncf %82 : vector<4x16xf32> to vector<4x16xbf16>
    %c0_70 = arith.constant 0 : index
    %c1_71 = arith.constant 1 : index
    %c0_72 = arith.constant 0 : index
    %c0_73 = arith.constant 0 : index
    %c0_74 = arith.constant 0 : index
    %84 = vector.load %arg12[%c0_70, %c1_71, %c0_72, %c0_73, %c0_74] : memref<1x2x1x4x16xbf16, #tpu.memory_space<vmem>>, vector<1x1x1x4x16xbf16>
    %85 = vector.shape_cast %84 : vector<1x1x1x4x16xbf16> to vector<4x16xbf16>
    %86 = vector.shape_cast %83 : vector<4x16xbf16> to vector<1x1x1x4x16xbf16>
    tpu.vector_store %arg12[%c0_70, %c1_71, %c0_72, %c0_73, %c0_74], %86 {strides = array<i32>} : memref<1x2x1x4x16xbf16, #tpu.memory_space<vmem>>, vector<1x1x1x4x16xbf16>,
    return
  }
  func.func @transform_0(%arg0: i32, %arg1: i32) -> (i32, i32, i32, i32, i32) {
    %c0_i32 = arith.constant 0 : i32
    %c0_i32_0 = arith.constant 0 : i32
    %c0_i32_1 = arith.constant 0 : i32
    %c0_i32_2 = arith.constant 0 : i32
    return %arg0, %arg1, %c0_i32, %c0_i32_0, %c0_i32_1 : i32, i32, i32, i32, i32
  }
  func.func @transform_1(%arg0: i32, %arg1: i32) -> (i32, i32, i32) {
    %c0_i32 = arith.constant 0 : i32
    %c0_i32_0 = arith.constant 0 : i32
    %c0_i32_1 = arith.constant 0 : i32
    %c0_i32_2 = arith.constant 0 : i32
    return %c0_i32, %c0_i32_0, %c0_i32_1 : i32, i32, i32
  }
  func.func @transform_2(%arg0: i32, %arg1: i32) -> (i32, i32) {
    %c0_i32 = arith.constant 0 : i32
    %c0_i32_0 = arith.constant 0 : i32
    %c0_i32_1 = arith.constant 0 : i32
    return %c0_i32, %c0_i32_0 : i32, i32
  }
  func.func @transform_3(%arg0: i32, %arg1: i32) -> (i32, i32) {
    %c0_i32 = arith.constant 0 : i32
    %c0_i32_0 = arith.constant 0 : i32
    %c0_i32_1 = arith.constant 0 : i32
    return %c0_i32, %c0_i32_0 : i32, i32
  }
  func.func @transform_4(%arg0: i32, %arg1: i32) -> (i32, i32) {
    %c0_i32 = arith.constant 0 : i32
    %c0_i32_0 = arith.constant 0 : i32
    %c0_i32_1 = arith.constant 0 : i32
    return %c0_i32, %c0_i32_0 : i32, i32
  }
  func.func @transform_5(%arg0: i32, %arg1: i32) -> (i32, i32, i32) {
    %c0_i32 = arith.constant 0 : i32
    %c0_i32_0 = arith.constant 0 : i32
    %c0_i32_1 = arith.constant 0 : i32
    %c0_i32_2 = arith.constant 0 : i32
    return %c0_i32, %c0_i32_0, %c0_i32_1 : i32, i32, i32
  }
  func.func @transform_6(%arg0: i32, %arg1: i32) -> (i32, i32, i32) {
    %c0_i32 = arith.constant 0 : i32
    %c0_i32_0 = arith.constant 0 : i32
    %c0_i32_1 = arith.constant 0 : i32
    %c0_i32_2 = arith.constant 0 : i32
    return %c0_i32, %c0_i32_0, %c0_i32_1 : i32, i32, i32
  }
  func.func @transform_7(%arg0: i32, %arg1: i32) -> (i32, i32, i32) {
    %c0_i32 = arith.constant 0 : i32
    %c0_i32_0 = arith.constant 0 : i32
    %c0_i32_1 = arith.constant 0 : i32
    %c0_i32_2 = arith.constant 0 : i32
    return %c0_i32, %c0_i32_0, %c0_i32_1 : i32, i32, i32
  }
  func.func @transform_8(%arg0: i32, %arg1: i32) -> (i32, i32, i32) {
    %c0_i32 = arith.constant 0 : i32
    %c0_i32_0 = arith.constant 0 : i32
    %c0_i32_1 = arith.constant 0 : i32
    %c0_i32_2 = arith.constant 0 : i32
    return %c0_i32, %c0_i32_0, %c0_i32_1 : i32, i32, i32
  }
  func.func @transform_9(%arg0: i32, %arg1: i32) -> (i32, i32, i32, i32, i32) {
    %c0_i32 = arith.constant 0 : i32
    %c0_i32_0 = arith.constant 0 : i32
    %c0_i32_1 = arith.constant 0 : i32
    %c0_i32_2 = arith.constant 0 : i32
    return %arg0, %c0_i32, %arg1, %c0_i32_0, %c0_i32_1 : i32, i32, i32, i32, i32
  }
  func.func @transform_10(%arg0: i32, %arg1: i32) -> (i32, i32, i32, i32, i32) {
    %c0_i32 = arith.constant 0 : i32
    %c0_i32_0 = arith.constant 0 : i32
    %c0_i32_1 = arith.constant 0 : i32
    %c0_i32_2 = arith.constant 0 : i32
    return %arg0, %c0_i32, %arg1, %c0_i32_0, %c0_i32_1 : i32, i32, i32, i32, i32
  }
}

</mosaic_0001>

<llo_original>
// kernel: tpu_custom_call.1
$region0: #{tpu_custom_call.1}
  #allocation0 [shape = 'u32[]', space=smem, size = 0x4, offset = 0x4, fixed_abs, tag = 'smem constant byte address 0x4 - core index']
  #allocation1 [shape = 'u32[144,128]{1,0:T(1,128)}', space=vmem, size = 0x12000, scoped, tag = 'internal scratch']
  %s0 = inlined_call_operand.vmem [shape: f32[2,4,2,4,64], index: 0, kind: input, shape index: {}]
  %s1 = inlined_call_operand.vmem [shape: bf16[2,64,32], index: 1, kind: input, shape index: {}]
  %s2 = inlined_call_operand.vmem [shape: f32[1,32], index: 2, kind: input, shape index: {}]
  %s3 = inlined_call_operand.vmem [shape: f32[1,32], index: 3, kind: input, shape index: {}]
  %s4 = inlined_call_operand.vmem [shape: f32[1,32], index: 4, kind: input, shape index: {}]
  %s5 = inlined_call_operand.vmem [shape: bf16[2,32,16], index: 5, kind: input, shape index: {}]
  %s6 = inlined_call_operand.vmem [shape: f32[2,1,16], index: 6, kind: input, shape index: {}]
  %s7 = inlined_call_operand.vmem [shape: bf16[2,32,16], index: 7, kind: input, shape index: {}]
  %s8 = inlined_call_operand.vmem [shape: f32[2,1,16], index: 8, kind: input, shape index: {}]
  %s9 = inlined_call_operand.hbm [shape: bf16[2,2,4,4,16], index: 9, kind: output, shape index: {0}]
  %s10 = inlined_call_operand.hbm [shape: bf16[2,2,4,4,16], index: 10, kind: output, shape index: {1}]
  %11 = xla_tuple %s9, %s10
  %s12 = sld [smem:[#allocation0]]
  $region77: #{tpu_custom_call.1} parent=0
    _
  %s14 = ssub.s32 1, %s12
  %s15 = scalar_select 0, %s14, %s12
  $region1: #{tpu_custom_call.1} parent=0
    #allocation2 [shape = 'u8[4096]{0}', space=vmem, size = 0x1000, scoped, tag = 'output window, operand 0']
    #allocation3 [shape = 's32[2]{0}', space=sflag, size = 0x8, scoped, tag = 'scoped memory for tpu_custom_call.1']
    #allocation4 [shape = 'u8[4096]{0}', space=vmem, size = 0x1000, scoped, tag = 'output window, operand 1']
    #allocation5 [shape = 's32[2]{0}', space=sflag, size = 0x8, scoped, tag = 'scoped memory for tpu_custom_call.1']
    %16 = vsyncpa [#allocation3], 0
    %s17 = scalar_lea.sflag [#allocation3], 1
    %18 = vsyncpa %s17, 0
    %19 = vsyncpa [#allocation5], 0
    %s20 = scalar_lea.sflag [#allocation5], 1
    %21 = vsyncpa %s20, 0
    loop: start=0, step=1, limit=10
    $region2: #{tpu_custom_call.1} parent=1 // loop_pre_header
      _
    $region3: #{tpu_custom_call.1} parent=1 // loop_header
      %s23 = sphi 0, %s27
      %p24 = scmp.ge.s32.totalorder %s23, 10
      %s30 = sphi 0, %s42
      %s31 = sphi 0, %s38
      %s32 = sphi 0, %s30
      %s33 = sphi 0, %s31
      %s34 = sphi 0, %s32
      %s35 = sphi 0, %s33
      %s47 = sphi 0, %s49
      %s50 = sphi 0, %s47
      %s51 = sphi 0, %s50
      %s67 = sphi 0, %s51
      %s71 = sphi 0, %s71
      %s73 = sphi 0, %s71
      %s74 = sphi 0, %s73
      %s88 = sphi 0, %s74
      %s92 = sphi 0, %s92
      %s94 = sphi 0, %s92
      %s95 = sphi 0, %s94
      %s109 = sphi 0, %s95
      %s113 = sphi 0, %s113
      %s115 = sphi 0, %s113
      %s116 = sphi 0, %s115
      %s130 = sphi 0, %s116
      %s134 = sphi 0, %s134
      %s136 = sphi 0, %s134
      %s137 = sphi 0, %s136
      %s151 = sphi 0, %s137
      %s155 = sphi 0, %s155
      %s157 = sphi 0, %s155
      %s158 = sphi 0, %s157
      %s172 = sphi 0, %s158
      %s176 = sphi 0, %s176
      %s178 = sphi 0, %s176
      %s179 = sphi 0, %s178
      %s193 = sphi 0, %s179
      %s197 = sphi 0, %s197
      %s199 = sphi 0, %s197
      %s200 = sphi 0, %s199
      %s214 = sphi 0, %s200
      %s218 = sphi 0, %s218
      %s220 = sphi 0, %s218
      %s221 = sphi 0, %s220
      %s235 = sphi 0, %s221
      %s243 = sphi 0, %s245
      %s246 = sphi 0, %s243
      %s247 = sphi 0, %s246
      %s263 = sphi 0, %s247
      %s271 = sphi 0, %s273
      %s274 = sphi 0, %s271
      %s275 = sphi 0, %s274
      %s291 = sphi 0, %s275
    $region4: #{tpu_custom_call.1} parent=1 // loop_header_branch
      %26 = sbr.rel (%p24) target = $region8
    $region5: #{tpu_custom_call.1} parent=1 // loop_body
      %s28 = ssub.s32 %s23, 1
      %s29 = ssub.s32 %s23, 2
      %s36 = sadd.s32 1, %s31
      %p37 = scmp.ge.s32.totalorder %s36, 4
      %s38 = scalar_select %p37, 0, %s36
      %s39 = sadd.s32 1, %s30
      %s40 = scalar_select %p37, %s39, %s30
      %p41 = scmp.ge.s32.totalorder %s40, 2
      %s42 = scalar_select %p41, 0, %s40
      %s43 = ssub.s32 %s30, %s42
      %s44 = ssub.s32 %s31, %s38
      %s45 = sor.u32 %s43, %s44
      %p46 = scmp.eq.s32.totalorder %s45, 0
      %s48 = sadd.s32 %s47, 1
      %s49 = scalar_select %p46, %s47, %s48
      %p52 = pneg %p46
      %p53 = scmp.eq.s32.totalorder %s23, 7
      %p54 = por %p52, %p53
      %p55 = scmp.ne.s32.totalorder %s47, %s50
      %p56 = scmp.eq.s32.totalorder %s23, 0
      %p57 = por %p55, %p56
      %p58 = scmp.ne.s32.totalorder %s47, %s50
      %p59 = scmp.eq.s32.totalorder %s28, 7
      %p60 = por %p58, %p59
      %p61 = scmp.ne.s32.totalorder %s50, %s51
      %p62 = scmp.eq.s32.totalorder %s28, 0
      %p63 = por %p61, %p62
      %p64 = scmp.ne.s32.totalorder %s50, %s51
      %p65 = scmp.eq.s32.totalorder %s29, 7
      %p66 = por %p64, %p65
      %p68 = scmp.ne.s32.totalorder %s51, %s67
      %p69 = scmp.eq.s32.totalorder %s29, 0
      %p70 = por %p68, %p69
      %s72 = sadd.s32 %s71, 1
      %p75 = scmp.eq.s32.totalorder %s23, 7
      %p76 = scmp.ne.s32.totalorder %s71, %s73
      %p77 = scmp.eq.s32.totalorder %s23, 0
      %p78 = por %p76, %p77
      %p79 = scmp.ne.s32.totalorder %s71, %s73
      %p80 = scmp.eq.s32.totalorder %s28, 7
      %p81 = por %p79, %p80
      %p82 = scmp.ne.s32.totalorder %s73, %s74
      %p83 = scmp.eq.s32.totalorder %s28, 0
      %p84 = por %p82, %p83
      %p85 = scmp.ne.s32.totalorder %s73, %s74
      %p86 = scmp.eq.s32.totalorder %s29, 7
      %p87 = por %p85, %p86
      %p89 = scmp.ne.s32.totalorder %s74, %s88
      %p90 = scmp.eq.s32.totalorder %s29, 0
      %p91 = por %p89, %p90
      %s93 = sadd.s32 %s92, 1
      %p96 = scmp.eq.s32.totalorder %s23, 7
      %p97 = scmp.ne.s32.totalorder %s92, %s94
      %p98 = scmp.eq.s32.totalorder %s23, 0
      %p99 = por %p97, %p98
      %p100 = scmp.ne.s32.totalorder %s92, %s94
      %p101 = scmp.eq.s32.totalorder %s28, 7
      %p102 = por %p100, %p101
      %p103 = scmp.ne.s32.totalorder %s94, %s95
      %p104 = scmp.eq.s32.totalorder %s28, 0
      %p105 = por %p103, %p104
      %p106 = scmp.ne.s32.totalorder %s94, %s95
      %p107 = scmp.eq.s32.totalorder %s29, 7
      %p108 = por %p106, %p107
      %p110 = scmp.ne.s32.totalorder %s95, %s109
      %p111 = scmp.eq.s32.totalorder %s29, 0
      %p112 = por %p110, %p111
      %s114 = sadd.s32 %s113, 1
      %p117 = scmp.eq.s32.totalorder %s23, 7
      %p118 = scmp.ne.s32.totalorder %s113, %s115
      %p119 = scmp.eq.s32.totalorder %s23, 0
      %p120 = por %p118, %p119
      %p121 = scmp.ne.s32.totalorder %s113, %s115
      %p122 = scmp.eq.s32.totalorder %s28, 7
      %p123 = por %p121, %p122
      %p124 = scmp.ne.s32.totalorder %s115, %s116
      %p125 = scmp.eq.s32.totalorder %s28, 0
      %p126 = por %p124, %p125
      %p127 = scmp.ne.s32.totalorder %s115, %s116
      %p128 = scmp.eq.s32.totalorder %s29, 7
      %p129 = por %p127, %p128
      %p131 = scmp.ne.s32.totalorder %s116, %s130
      %p132 = scmp.eq.s32.totalorder %s29, 0
      %p133 = por %p131, %p132
      %s135 = sadd.s32 %s134, 1
      %p138 = scmp.eq.s32.totalorder %s23, 7
      %p139 = scmp.ne.s32.totalorder %s134, %s136
      %p140 = scmp.eq.s32.totalorder %s23, 0
      %p141 = por %p139, %p140
      %p142 = scmp.ne.s32.totalorder %s134, %s136
      %p143 = scmp.eq.s32.totalorder %s28, 7
      %p144 = por %p142, %p143
      %p145 = scmp.ne.s32.totalorder %s136, %s137
      %p146 = scmp.eq.s32.totalorder %s28, 0
      %p147 = por %p145, %p146
      %p148 = scmp.ne.s32.totalorder %s136, %s137
      %p149 = scmp.eq.s32.totalorder %s29, 7
      %p150 = por %p148, %p149
      %p152 = scmp.ne.s32.totalorder %s137, %s151
      %p153 = scmp.eq.s32.totalorder %s29, 0
      %p154 = por %p152, %p153
      %s156 = sadd.s32 %s155, 1
      %p159 = scmp.eq.s32.totalorder %s23, 7
      %p160 = scmp.ne.s32.totalorder %s155, %s157
      %p161 = scmp.eq.s32.totalorder %s23, 0
      %p162 = por %p160, %p161
      %p163 = scmp.ne.s32.totalorder %s155, %s157
      %p164 = scmp.eq.s32.totalorder %s28, 7
      %p165 = por %p163, %p164
      %p166 = scmp.ne.s32.totalorder %s157, %s158
      %p167 = scmp.eq.s32.totalorder %s28, 0
      %p168 = por %p166, %p167
      %p169 = scmp.ne.s32.totalorder %s157, %s158
      %p170 = scmp.eq.s32.totalorder %s29, 7
      %p171 = por %p169, %p170
      %p173 = scmp.ne.s32.totalorder %s158, %s172
      %p174 = scmp.eq.s32.totalorder %s29, 0
      %p175 = por %p173, %p174
      %s177 = sadd.s32 %s176, 1
      %p180 = scmp.eq.s32.totalorder %s23, 7
      %p181 = scmp.ne.s32.totalorder %s176, %s178
      %p182 = scmp.eq.s32.totalorder %s23, 0
      %p183 = por %p181, %p182
      %p184 = scmp.ne.s32.totalorder %s176, %s178
      %p185 = scmp.eq.s32.totalorder %s28, 7
      %p186 = por %p184, %p185
      %p187 = scmp.ne.s32.totalorder %s178, %s179
      %p188 = scmp.eq.s32.totalorder %s28, 0
      %p189 = por %p187, %p188
      %p190 = scmp.ne.s32.totalorder %s178, %s179
      %p191 = scmp.eq.s32.totalorder %s29, 7
      %p192 = por %p190, %p191
      %p194 = scmp.ne.s32.totalorder %s179, %s193
      %p195 = scmp.eq.s32.totalorder %s29, 0
      %p196 = por %p194, %p195
      %s198 = sadd.s32 %s197, 1
      %p201 = scmp.eq.s32.totalorder %s23, 7
      %p202 = scmp.ne.s32.totalorder %s197, %s199
      %p203 = scmp.eq.s32.totalorder %s23, 0
      %p204 = por %p202, %p203
      %p205 = scmp.ne.s32.totalorder %s197, %s199
      %p206 = scmp.eq.s32.totalorder %s28, 7
      %p207 = por %p205, %p206
      %p208 = scmp.ne.s32.totalorder %s199, %s200
      %p209 = scmp.eq.s32.totalorder %s28, 0
      %p210 = por %p208, %p209
      %p211 = scmp.ne.s32.totalorder %s199, %s200
      %p212 = scmp.eq.s32.totalorder %s29, 7
      %p213 = por %p211, %p212
      %p215 = scmp.ne.s32.totalorder %s200, %s214
      %p216 = scmp.eq.s32.totalorder %s29, 0
      %p217 = por %p215, %p216
      %s219 = sadd.s32 %s218, 1
      %p222 = scmp.eq.s32.totalorder %s23, 7
      %p223 = scmp.ne.s32.totalorder %s218, %s220
      %p224 = scmp.eq.s32.totalorder %s23, 0
      %p225 = por %p223, %p224
      %p226 = scmp.ne.s32.totalorder %s218, %s220
      %p227 = scmp.eq.s32.totalorder %s28, 7
      %p228 = por %p226, %p227
      %p229 = scmp.ne.s32.totalorder %s220, %s221
      %p230 = scmp.eq.s32.totalorder %s28, 0
      %p231 = por %p229, %p230
      %p232 = scmp.ne.s32.totalorder %s220, %s221
      %p233 = scmp.eq.s32.totalorder %s29, 7
      %p234 = por %p232, %p233
      %p236 = scmp.ne.s32.totalorder %s221, %s235
      %p237 = scmp.eq.s32.totalorder %s29, 0
      %p238 = por %p236, %p237
      %s239 = ssub.s32 %s30, %s42
      %s240 = ssub.s32 %s31, %s38
      %s241 = sor.u32 %s239, %s240
      %p242 = scmp.eq.s32.totalorder %s241, 0
      %s244 = sadd.s32 %s243, 1
      %s245 = scalar_select %p242, %s243, %s244
      %p248 = pneg %p242
      %p249 = scmp.eq.s32.totalorder %s23, 7
      %p250 = por %p248, %p249
      %p251 = scmp.ne.s32.totalorder %s243, %s246
      %p252 = scmp.eq.s32.totalorder %s23, 0
      %p253 = por %p251, %p252
      %p254 = scmp.ne.s32.totalorder %s243, %s246
      %p255 = scmp.eq.s32.totalorder %s28, 7
      %p256 = por %p254, %p255
      %p257 = scmp.ne.s32.totalorder %s246, %s247
      %p258 = scmp.eq.s32.totalorder %s28, 0
      %p259 = por %p257, %p258
      %p260 = scmp.ne.s32.totalorder %s246, %s247
      %p261 = scmp.eq.s32.totalorder %s29, 7
      %p262 = por %p260, %p261
      %p264 = scmp.ne.s32.totalorder %s247, %s263
      %p265 = scmp.eq.s32.totalorder %s29, 0
      %p266 = por %p264, %p265
      %s267 = ssub.s32 %s30, %s42
      %s268 = ssub.s32 %s31, %s38
      %s269 = sor.u32 %s267, %s268
      %p270 = scmp.eq.s32.totalorder %s269, 0
      %s272 = sadd.s32 %s271, 1
      %s273 = scalar_select %p270, %s271, %s272
      %p276 = pneg %p270
      %p277 = scmp.eq.s32.totalorder %s23, 7
      %p278 = por %p276, %p277
      %p279 = scmp.ne.s32.totalorder %s271, %s274
      %p280 = scmp.eq.s32.totalorder %s23, 0
      %p281 = por %p279, %p280
      %p282 = scmp.ne.s32.totalorder %s271, %s274
      %p283 = scmp.eq.s32.totalorder %s28, 7
      %p284 = por %p282, %p283
      %p285 = scmp.ne.s32.totalorder %s274, %s275
      %p286 = scmp.eq.s32.totalorder %s28, 0
      %p287 = por %p285, %p286
      %p288 = scmp.ne.s32.totalorder %s274, %s275
      %p289 = scmp.eq.s32.totalorder %s29, 7
      %p290 = por %p288, %p289
      %p292 = scmp.ne.s32.totalorder %s275, %s291
      %p293 = scmp.eq.s32.totalorder %s29, 0
      %p294 = por %p292, %p293
      %p295 = scmp.le.s32.totalorder 1, %s23
      %p296 = scmp.lt.s32.totalorder %s23, 9
      %p297 = pnand %p295, %p296
      %p298 = pneg %p297
      // Predicated region
      $region9: #{tpu_custom_call.1} parent=5 // pred_check
        _
      $region10: #{tpu_custom_call.1} parent=5 // pred_check_branch
        %300 = sbr.rel (%p297) target = $region12
      $region11: #{tpu_custom_call.1} parent=5 // pred_region
        %s301 = ssub.s32 %s23, 1
        // Predicated region
        $region13: #{tpu_custom_call.1} parent=11 // pred_check
          %p302 = pneg %p84
        $region14: #{tpu_custom_call.1} parent=11 // pred_check_branch
          %304 = sbr.rel (%p302) target = $region16
        $region15: #{tpu_custom_call.1} parent=11 // pred_region
          _
        $region16: #{tpu_custom_call.1} parent=11 // pred_fallthru
          _
        // Predicated region
        $region17: #{tpu_custom_call.1} parent=11 // pred_check
          %p305 = pneg %p105
        $region18: #{tpu_custom_call.1} parent=11 // pred_check_branch
          %307 = sbr.rel (%p305) target = $region20
        $region19: #{tpu_custom_call.1} parent=11 // pred_region
          _
        $region20: #{tpu_custom_call.1} parent=11 // pred_fallthru
          _
        // Predicated region
        $region21: #{tpu_custom_call.1} parent=11 // pred_check
          %p308 = pneg %p126
        $region22: #{tpu_custom_call.1} parent=11 // pred_check_branch
          %310 = sbr.rel (%p308) target = $region24
        $region23: #{tpu_custom_call.1} parent=11 // pred_region
          _
        $region24: #{tpu_custom_call.1} parent=11 // pred_fallthru
          _
        // Predicated region
        $region25: #{tpu_custom_call.1} parent=11 // pred_check
          %p311 = pneg %p147
        $region26: #{tpu_custom_call.1} parent=11 // pred_check_branch
          %313 = sbr.rel (%p311) target = $region28
        $region27: #{tpu_custom_call.1} parent=11 // pred_region
          _
        $region28: #{tpu_custom_call.1} parent=11 // pred_fallthru
          _
        // Predicated region
        $region29: #{tpu_custom_call.1} parent=11 // pred_check
          %p314 = pneg %p168
        $region30: #{tpu_custom_call.1} parent=11 // pred_check_branch
          %316 = sbr.rel (%p314) target = $region32
        $region31: #{tpu_custom_call.1} parent=11 // pred_region
          _
        $region32: #{tpu_custom_call.1} parent=11 // pred_fallthru
          _
        // Predicated region
        $region33: #{tpu_custom_call.1} parent=11 // pred_check
          %p317 = pneg %p189
        $region34: #{tpu_custom_call.1} parent=11 // pred_check_branch
          %319 = sbr.rel (%p317) target = $region36
        $region35: #{tpu_custom_call.1} parent=11 // pred_region
          _
        $region36: #{tpu_custom_call.1} parent=11 // pred_fallthru
          _
        // Predicated region
        $region37: #{tpu_custom_call.1} parent=11 // pred_check
          %p320 = pneg %p210
        $region38: #{tpu_custom_call.1} parent=11 // pred_check_branch
          %322 = sbr.rel (%p320) target = $region40
        $region39: #{tpu_custom_call.1} parent=11 // pred_region
          _
        $region40: #{tpu_custom_call.1} parent=11 // pred_fallthru
          _
        // Predicated region
        $region41: #{tpu_custom_call.1} parent=11 // pred_check
          %p323 = pneg %p231
        $region42: #{tpu_custom_call.1} parent=11 // pred_check_branch
          %325 = sbr.rel (%p323) target = $region44
        $region43: #{tpu_custom_call.1} parent=11 // pred_region
          _
        $region44: #{tpu_custom_call.1} parent=11 // pred_fallthru
          _
      $region12: #{tpu_custom_call.1} parent=5 // pred_fallthru
        _
      %p326 = scmp.lt.s32.totalorder %s23, 8
      // Predicated region
      $region45: #{tpu_custom_call.1} parent=5 // pred_check
        %p327 = pneg %p326
      $region46: #{tpu_custom_call.1} parent=5 // pred_check_branch
        %329 = sbr.rel (%p327) target = $region48
      $region47: #{tpu_custom_call.1} parent=5 // pred_region
        // Predicated region
        $region49: #{tpu_custom_call.1} parent=47 // pred_check
          %p330 = pneg %p57
        $region50: #{tpu_custom_call.1} parent=47 // pred_check_branch
          %332 = sbr.rel (%p330) target = $region52
        $region51: #{tpu_custom_call.1} parent=47 // pred_region
          %p333 = scmp.lt.s32.totalorder %s30, 1
          %s334 = scalar_select %p333, %s30, 1
          %p335 = scmp.lt.s32.totalorder %s31, 3
          %s336 = scalar_select %p335, %s31, 3
          %s337 = smul.addr %s336, 2
          %s338 = smul.addr %s334, 8
          %s339 = sadd.s32 %s337, %s338
          %s340 = smul.addr %s339, 4
          %s341 = scalar_lea.vmem %s0, %s340
        $region52: #{tpu_custom_call.1} parent=47 // pred_fallthru
          _
      $region48: #{tpu_custom_call.1} parent=5 // pred_fallthru
        _
      %p342 = scmp.le.s32.totalorder 1, %s23
      %p343 = scmp.lt.s32.totalorder %s23, 9
      %p344 = pnand %p342, %p343
      %p345 = pneg %p344
      // Predicated region
      $region53: #{tpu_custom_call.1} parent=5 // pred_check
        _
      $region54: #{tpu_custom_call.1} parent=5 // pred_check_branch
        %347 = sbr.rel (%p344) target = $region56
      $region55: #{tpu_custom_call.1} parent=5 // pred_region
        %s348 = ssub.s32 %s23, 1
        %p349 = scmp.lt.s32.totalorder %s32, 1
        %s350 = scalar_select %p349, %s32, 1
        %p351 = scmp.lt.s32.totalorder %s33, 3
        %s352 = scalar_select %p351, %s33, 3
        %s353 = smul.addr %s352, 2
        %s354 = smul.addr %s350, 8
        %s355 = sadd.s32 %s353, %s354
        %s356 = smul.addr %s355, 4
        %s357 = scalar_lea.vmem %s0, %s356
        %p358 = pneg %p63
        %p359 = pneg %p60
        %p360 = pneg %p84
        %p361 = pneg %p81
        %p362 = pneg %p105
        %p363 = pneg %p102
        %p364 = pneg %p126
        %p365 = pneg %p123
        %p366 = pneg %p147
        %p367 = pneg %p144
        %p368 = pneg %p168
        %p369 = pneg %p165
        %p370 = pneg %p189
        %p371 = pneg %p186
        %p372 = pneg %p210
        %p373 = pneg %p207
        %p374 = pneg %p231
        %p375 = pneg %p228
        %p376 = pneg %p259
        %p377 = pneg %p256
        %s378 = sand.u32 %s246, 1
        %s379 = scalar_lea.sflag [#allocation3], %s378
        %s380 = sand.u32 %s246, 1
        %s381 = smul.addr %s380, 4
        %s382 = scalar_lea.vmem [#allocation2], %s381
        %p383 = pneg %p287
        %p384 = pneg %p284
        %s385 = sand.u32 %s274, 1
        %s386 = scalar_lea.sflag [#allocation5], %s385
        %s387 = sand.u32 %s274, 1
        %s388 = smul.addr %s387, 4
        %s389 = scalar_lea.vmem [#allocation4], %s388
        %p390 = scmp.lt.s32.totalorder %s32, 1
        %s391 = scalar_select %p390, %s32, 1
        %p392 = scmp.lt.s32.totalorder %s33, 3
        %s393 = scalar_select %p392, %s33, 3
        %s394 = smul.addr %s393, 2
        %s395 = smul.addr %s391, 8
        %s396 = sadd.s32 %s394, %s395
        %s397 = smul.addr %s396, 4
        %s398 = scalar_lea.vmem %s0, %s397
        %v400 = vld [vmem:[%s398] sm:$0xf]
        %v401 = vpack.c.bf16 %v400, %v400
        %v402 = vld [vmem:[%s1] sm:$0xf]
        %v403 = vld [vmem:[%s1 + $0x4] sm:$0xf]
        %v404 = vld [vmem:[%s1 + $0x8] sm:$0xf]
        %v405 = vld [vmem:[%s1 + $0xc] sm:$0xf]
        %v406 = vld [vmem:[%s1 + $0x10] sm:$0xf]
        %v407 = vld [vmem:[%s1 + $0x14] sm:$0xf]
        %v408 = vld [vmem:[%s1 + $0x18] sm:$0xf]
        %v409 = vld [vmem:[%s1 + $0x1c] sm:$0xf]
        %s410 = scalar_lea.vmem %s398, 4
        %v411 = vld [vmem:[%s410] sm:$0xf]
        %v412 = vpack.c.bf16 %v411, %v411
        %s413 = scalar_lea.vmem %s1, 32
        %v414 = vld [vmem:[%s413] sm:$0xf]
        %v415 = vld [vmem:[%s413 + $0x4] sm:$0xf]
        %v416 = vld [vmem:[%s413 + $0x8] sm:$0xf]
        %v417 = vld [vmem:[%s413 + $0xc] sm:$0xf]
        %v418 = vld [vmem:[%s413 + $0x10] sm:$0xf]
        %v419 = vld [vmem:[%s413 + $0x14] sm:$0xf]
        %v420 = vld [vmem:[%s413 + $0x18] sm:$0xf]
        %v421 = vld [vmem:[%s413 + $0x1c] sm:$0xf]
        %v430 = vunpack.c.l.b16 %v414
        %v431 = vunpack.c.l.b16 %v415
        %v432 = vunpack.c.l.b16 %v416
        %v433 = vunpack.c.l.b16 %v417
        %v434 = vunpack.c.l.b16 %v418
        %v435 = vunpack.c.l.b16 %v419
        %v436 = vunpack.c.l.b16 %v420
        %v437 = vunpack.c.l.b16 %v421
        %v438 = vpack.c.b16 %v431, %v430
        %v439 = vpack.c.b16 %v433, %v432
        %v440 = vpack.c.b16 %v435, %v434
        %v441 = vpack.c.b16 %v437, %v436
        %vm446 = vcmask 523264
        %v448 = vsel %vm446, %v412, 0
        %450 = vmatprep.subr.bf16.mxu0 0
        %451 = vmatpush1.bf16.msra.mxu0 0
        %452 = vmatprep.subr.bf16.mxu0 0
        %453 = vmatpush1.bf16.msra.mxu0 0
        %454 = vmatprep.subr.bf16.mxu0 0
        %455 = vmatpush1.bf16.msra.mxu0 0
        %456 = vmatprep.subr.bf16.mxu0 0
        %457 = vmatpush1.bf16.msra.mxu0 0
        %458 = vmatprep.subr.bf16.mxu0 0
        %459 = vmatpush1.bf16.msra.mxu0 %v441
        %460 = vmatprep.subr.bf16.mxu0 0
        %461 = vmatpush1.bf16.msra.mxu0 %v440
        %462 = vmatprep.subr.bf16.mxu0 0
        %463 = vmatpush1.bf16.msra.mxu0 %v439
        %464 = vmatprep.subr.bf16.mxu0 0
        %465 = vmatpush1.bf16.msra.mxu0 %v438
        %466 = vmatprep.subr.bf16.mxu0 0
        %467 = vmatpush2.bf16.msra.mxu0 0
        %468 = vmatprep.subr.bf16.mxu0 0
        %469 = vmatpush2.bf16.msra.mxu0 0
        %470 = vmatprep.subr.bf16.mxu0 0
        %471 = vmatpush2.bf16.msra.mxu0 0
        %472 = vmatprep.subr.bf16.mxu0 0
        %473 = vmatpush2.bf16.msra.mxu0 0
        %474 = vmatprep.subr.bf16.mxu0 0
        %475 = vmatpush2.bf16.msra.mxu0 0
        %476 = vmatprep.subr.bf16.mxu0 0
        %477 = vmatpush2.bf16.msra.mxu0 0
        %478 = vmatprep.subr.bf16.mxu0 0
        %479 = vmatpush2.bf16.msra.mxu0 0
        %480 = vmatprep.subr.bf16.mxu0 0
        %481 = vmatpush2.bf16.msra.mxu0 0
        %482 = vmatprep.mubr.bf16.mxu0 0
        %483 = vmatmul.mubr.bf16.gmra.mxu0 %v448
        %v484 = vpop.f32.mrf.mxu0
        %v485 = vadd.f32 0.0, %v484
        %v486 = vpop.f32.mrf.mxu0
        %v487 = vpop.f32.mrf.mxu0
        %v488 = vpop.f32.mrf.mxu0
        %489 = vdwg.mxu0
        %v498 = vunpack.c.l.b16 %v402
        %v499 = vunpack.c.l.b16 %v403
        %v500 = vunpack.c.l.b16 %v404
        %v501 = vunpack.c.l.b16 %v405
        %v502 = vunpack.c.l.b16 %v406
        %v503 = vunpack.c.l.b16 %v407
        %v504 = vunpack.c.l.b16 %v408
        %v505 = vunpack.c.l.b16 %v409
        %v506 = vpack.c.b16 %v499, %v498
        %v507 = vpack.c.b16 %v501, %v500
        %v508 = vpack.c.b16 %v503, %v502
        %v509 = vpack.c.b16 %v505, %v504
        %v515 = vsel %vm446, %v401, 0
        %517 = vmatprep.subr.bf16.mxu0 0
        %518 = vmatpush1.bf16.msra.mxu0 0
        %519 = vmatprep.subr.bf16.mxu0 0
        %520 = vmatpush1.bf16.msra.mxu0 0
        %521 = vmatprep.subr.bf16.mxu0 0
        %522 = vmatpush1.bf16.msra.mxu0 0
        %523 = vmatprep.subr.bf16.mxu0 0
        %524 = vmatpush1.bf16.msra.mxu0 0
        %525 = vmatprep.subr.bf16.mxu0 0
        %526 = vmatpush1.bf16.msra.mxu0 %v509
        %527 = vmatprep.subr.bf16.mxu0 0
        %528 = vmatpush1.bf16.msra.mxu0 %v508
        %529 = vmatprep.subr.bf16.mxu0 0
        %530 = vmatpush1.bf16.msra.mxu0 %v507
        %531 = vmatprep.subr.bf16.mxu0 0
        %532 = vmatpush1.bf16.msra.mxu0 %v506
        %533 = vmatprep.subr.bf16.mxu0 0
        %534 = vmatpush2.bf16.msra.mxu0 0
        %535 = vmatprep.subr.bf16.mxu0 0
        %536 = vmatpush2.bf16.msra.mxu0 0
        %537 = vmatprep.subr.bf16.mxu0 0
        %538 = vmatpush2.bf16.msra.mxu0 0
        %539 = vmatprep.subr.bf16.mxu0 0
        %540 = vmatpush2.bf16.msra.mxu0 0
        %541 = vmatprep.subr.bf16.mxu0 0
        %542 = vmatpush2.bf16.msra.mxu0 0
        %543 = vmatprep.subr.bf16.mxu0 0
        %544 = vmatpush2.bf16.msra.mxu0 0
        %545 = vmatprep.subr.bf16.mxu0 0
        %546 = vmatpush2.bf16.msra.mxu0 0
        %547 = vmatprep.subr.bf16.mxu0 0
        %548 = vmatpush2.bf16.msra.mxu0 0
        %549 = vmatprep.mubr.bf16.mxu0 0
        %550 = vmatmul.mubr.bf16.gmra.mxu0 %v515
        %v551 = vpop.f32.mrf.mxu0
        %v552 = vadd.f32 %v485, %v551
        %v553 = vpop.f32.mrf.mxu0
        %v554 = vpop.f32.mrf.mxu0
        %v555 = vpop.f32.mrf.mxu0
        %556 = vdwg.mxu0
        %v557 = vld [vmem:[%s2] sm:$0x1]
        %v559 = vlaneseq
        %v560 = vshrl.u32 %v559, 7
        %v561 = vsub.s32 0, %v560
        %v562 = vrot.slane %v557, %v561
        %v564 = vadd.f32 %v552, %v562
        %vm565 = vcmask 257024
        %v566 = vsel %vm565, %v564, 0.0
        %567 = vadd.xlane.f32.xlu0 %v566
        %v568 = vpop.xlane.xlu0 %567
        %v569 = vrcp.pop 32.0
        %v570 = vmul.f32 %v568, %v569
        %v571 = vsub.f32 %v564, %v570
        %v572 = vmul.f32 %v571, %v571
        %v573 = vsel %vm565, %v572, 0.0
        %574 = vadd.xlane.f32.xlu0 %v573
        %v575 = vpop.xlane.xlu0 %574
        %v576 = vmul.f32 %v575, %v569
        %v577 = vadd.f32 %v576, 1e-05
        %v578 = vrsqrt.pop %v577
        %v579 = vmul.f32 %v571, %v578
        %v580 = vld [vmem:[%s3] sm:$0x1]
        %v582 = vlaneseq
        %v583 = vshrl.u32 %v582, 7
        %v584 = vsub.s32 0, %v583
        %v585 = vrot.slane %v580, %v584
        %v587 = vmul.f32 %v579, %v585
        %v588 = vld [vmem:[%s4] sm:$0x1]
        %v590 = vlaneseq
        %v591 = vshrl.u32 %v590, 7
        %v592 = vsub.s32 0, %v591
        %v593 = vrot.slane %v588, %v592
        %v595 = vadd.f32 %v587, %v593
        %v596 = vpack.c.bf16 %v595, %v595
        %v597 = vld [vmem:[%s5] sm:$0xf]
        %v598 = vld [vmem:[%s5 + $0x4] sm:$0xf]
        %v599 = vld [vmem:[%s5 + $0x8] sm:$0xf]
        %v600 = vld [vmem:[%s5 + $0xc] sm:$0xf]
        %v601 = vld [vmem:[%s6] sm:$0x1]
        %v603 = vlaneseq
        %v604 = vshrl.u32 %v603, 7
        %v605 = vsub.s32 0, %v604
        %v606 = vrot.slane %v601, %v605
        %v612 = vunpack.c.l.b16 %v597
        %v613 = vunpack.c.l.b16 %v598
        %v614 = vunpack.c.l.b16 %v599
        %v615 = vunpack.c.l.b16 %v600
        %v616 = vpack.c.b16 %v613, %v612
        %v617 = vpack.c.b16 %v615, %v614
        %vm620 = vcmask 261120
        %v622 = vsel %vm620, %v596, 0
        %624 = vmatprep.subr.bf16.mxu0 0
        %625 = vmatpush1.bf16.msra.mxu0 0
        %626 = vmatprep.subr.bf16.mxu0 0
        %627 = vmatpush1.bf16.msra.mxu0 0
        %628 = vmatprep.subr.bf16.mxu0 0
        %629 = vmatpush1.bf16.msra.mxu0 0
        %630 = vmatprep.subr.bf16.mxu0 0
        %631 = vmatpush1.bf16.msra.mxu0 0
        %632 = vmatprep.subr.bf16.mxu0 0
        %633 = vmatpush1.bf16.msra.mxu0 0
        %634 = vmatprep.subr.bf16.mxu0 0
        %635 = vmatpush1.bf16.msra.mxu0 0
        %636 = vmatprep.subr.bf16.mxu0 0
        %637 = vmatpush1.bf16.msra.mxu0 %v617
        %638 = vmatprep.subr.bf16.mxu0 0
        %639 = vmatpush1.bf16.msra.mxu0 %v616
        %640 = vmatprep.subr.bf16.mxu0 0
        %641 = vmatpush2.bf16.msra.mxu0 0
        %642 = vmatprep.subr.bf16.mxu0 0
        %643 = vmatpush2.bf16.msra.mxu0 0
        %644 = vmatprep.subr.bf16.mxu0 0
        %645 = vmatpush2.bf16.msra.mxu0 0
        %646 = vmatprep.subr.bf16.mxu0 0
        %647 = vmatpush2.bf16.msra.mxu0 0
        %648 = vmatprep.subr.bf16.mxu0 0
        %649 = vmatpush2.bf16.msra.mxu0 0
        %650 = vmatprep.subr.bf16.mxu0 0
        %651 = vmatpush2.bf16.msra.mxu0 0
        %652 = vmatprep.subr.bf16.mxu0 0
        %653 = vmatpush2.bf16.msra.mxu0 0
        %654 = vmatprep.subr.bf16.mxu0 0
        %655 = vmatpush2.bf16.msra.mxu0 0
        %656 = vmatprep.mubr.bf16.mxu0 0
        %657 = vmatmul.mubr.bf16.gmra.mxu0 %v622
        %v658 = vpop.f32.mrf.mxu0
        %v659 = vadd.f32 %v606, %v658
        %v660 = vpop.f32.mrf.mxu0
        %v661 = vpop.f32.mrf.mxu0
        %v662 = vpop.f32.mrf.mxu0
        %663 = vdwg.mxu0
        %v664 = vpack.c.bf16 %v659, %v659
        %vm665 = vcmask 123904
        %666 = vst.msk [vmem:[%s382] sm:$0x3] %vm665, %v664
        %v667 = vld [vmem:[%s7] sm:$0xf]
        %v668 = vld [vmem:[%s7 + $0x4] sm:$0xf]
        %v669 = vld [vmem:[%s7 + $0x8] sm:$0xf]
        %v670 = vld [vmem:[%s7 + $0xc] sm:$0xf]
        %v671 = vld [vmem:[%s8] sm:$0x1]
        %v673 = vlaneseq
        %v674 = vshrl.u32 %v673, 7
        %v675 = vsub.s32 0, %v674
        %v676 = vrot.slane %v671, %v675
        %v682 = vunpack.c.l.b16 %v667
        %v683 = vunpack.c.l.b16 %v668
        %v684 = vunpack.c.l.b16 %v669
        %v685 = vunpack.c.l.b16 %v670
        %v686 = vpack.c.b16 %v683, %v682
        %v687 = vpack.c.b16 %v685, %v684
        %690 = vmatprep.subr.bf16.mxu0 0
        %691 = vmatpush1.bf16.msra.mxu0 0
        %692 = vmatprep.subr.bf16.mxu0 0
        %693 = vmatpush1.bf16.msra.mxu0 0
        %694 = vmatprep.subr.bf16.mxu0 0
        %695 = vmatpush1.bf16.msra.mxu0 0
        %696 = vmatprep.subr.bf16.mxu0 0
        %697 = vmatpush1.bf16.msra.mxu0 0
        %698 = vmatprep.subr.bf16.mxu0 0
        %699 = vmatpush1.bf16.msra.mxu0 0
        %700 = vmatprep.subr.bf16.mxu0 0
        %701 = vmatpush1.bf16.msra.mxu0 0
        %702 = vmatprep.subr.bf16.mxu0 0
        %703 = vmatpush1.bf16.msra.mxu0 %v687
        %704 = vmatprep.subr.bf16.mxu0 0
        %705 = vmatpush1.bf16.msra.mxu0 %v686
        %706 = vmatprep.subr.bf16.mxu0 0
        %707 = vmatpush2.bf16.msra.mxu0 0
        %708 = vmatprep.subr.bf16.mxu0 0
        %709 = vmatpush2.bf16.msra.mxu0 0
        %710 = vmatprep.subr.bf16.mxu0 0
        %711 = vmatpush2.bf16.msra.mxu0 0
        %712 = vmatprep.subr.bf16.mxu0 0
        %713 = vmatpush2.bf16.msra.mxu0 0
        %714 = vmatprep.subr.bf16.mxu0 0
        %715 = vmatpush2.bf16.msra.mxu0 0
        %716 = vmatprep.subr.bf16.mxu0 0
        %717 = vmatpush2.bf16.msra.mxu0 0
        %718 = vmatprep.subr.bf16.mxu0 0
        %719 = vmatpush2.bf16.msra.mxu0 0
        %720 = vmatprep.subr.bf16.mxu0 0
        %721 = vmatpush2.bf16.msra.mxu0 0
        %722 = vmatprep.mubr.bf16.mxu0 0
        %723 = vmatmul.mubr.bf16.gmra.mxu0 %v622
        %v724 = vpop.f32.mrf.mxu0
        %v725 = vadd.f32 %v676, %v724
        %v726 = vpop.f32.mrf.mxu0
        %v727 = vpop.f32.mrf.mxu0
        %v728 = vpop.f32.mrf.mxu0
        %729 = vdwg.mxu0
        %v730 = vpack.c.bf16 %v725, %v725
        %731 = vst.msk [vmem:[%s389] sm:$0x3] %vm665, %v730
        %s732 = scalar_lea.vmem %s5, 16
        %v733 = vld [vmem:[%s732] sm:$0xf]
        %v734 = vld [vmem:[%s732 + $0x4] sm:$0xf]
        %v735 = vld [vmem:[%s732 + $0x8] sm:$0xf]
        %v736 = vld [vmem:[%s732 + $0xc] sm:$0xf]
        %s737 = scalar_lea.vmem %s6, 1
        %v738 = vld [vmem:[%s737] sm:$0x1]
        %v740 = vlaneseq
        %v741 = vshrl.u32 %v740, 7
        %v742 = vsub.s32 0, %v741
        %v743 = vrot.slane %v738, %v742
        %v749 = vunpack.c.l.b16 %v733
        %v750 = vunpack.c.l.b16 %v734
        %v751 = vunpack.c.l.b16 %v735
        %v752 = vunpack.c.l.b16 %v736
        %v753 = vpack.c.b16 %v750, %v749
        %v754 = vpack.c.b16 %v752, %v751
        %757 = vmatprep.subr.bf16.mxu0 0
        %758 = vmatpush1.bf16.msra.mxu0 0
        %759 = vmatprep.subr.bf16.mxu0 0
        %760 = vmatpush1.bf16.msra.mxu0 0
        %761 = vmatprep.subr.bf16.mxu0 0
        %762 = vmatpush1.bf16.msra.mxu0 0
        %763 = vmatprep.subr.bf16.mxu0 0
        %764 = vmatpush1.bf16.msra.mxu0 0
        %765 = vmatprep.subr.bf16.mxu0 0
        %766 = vmatpush1.bf16.msra.mxu0 0
        %767 = vmatprep.subr.bf16.mxu0 0
        %768 = vmatpush1.bf16.msra.mxu0 0
        %769 = vmatprep.subr.bf16.mxu0 0
        %770 = vmatpush1.bf16.msra.mxu0 %v754
        %771 = vmatprep.subr.bf16.mxu0 0
        %772 = vmatpush1.bf16.msra.mxu0 %v753
        %773 = vmatprep.subr.bf16.mxu0 0
        %774 = vmatpush2.bf16.msra.mxu0 0
        %775 = vmatprep.subr.bf16.mxu0 0
        %776 = vmatpush2.bf16.msra.mxu0 0
        %777 = vmatprep.subr.bf16.mxu0 0
        %778 = vmatpush2.bf16.msra.mxu0 0
        %779 = vmatprep.subr.bf16.mxu0 0
        %780 = vmatpush2.bf16.msra.mxu0 0
        %781 = vmatprep.subr.bf16.mxu0 0
        %782 = vmatpush2.bf16.msra.mxu0 0
        %783 = vmatprep.subr.bf16.mxu0 0
        %784 = vmatpush2.bf16.msra.mxu0 0
        %785 = vmatprep.subr.bf16.mxu0 0
        %786 = vmatpush2.bf16.msra.mxu0 0
        %787 = vmatprep.subr.bf16.mxu0 0
        %788 = vmatpush2.bf16.msra.mxu0 0
        %789 = vmatprep.mubr.bf16.mxu0 0
        %790 = vmatmul.mubr.bf16.gmra.mxu0 %v622
        %v791 = vpop.f32.mrf.mxu0
        %v792 = vadd.f32 %v743, %v791
        %v793 = vpop.f32.mrf.mxu0
        %v794 = vpop.f32.mrf.mxu0
        %v795 = vpop.f32.mrf.mxu0
        %796 = vdwg.mxu0
        %v797 = vpack.c.bf16 %v792, %v792
        %s798 = scalar_lea.vmem %s382, 2 [#allocation2]
        %799 = vst.msk [vmem:[%s798] sm:$0x3] %vm665, %v797
        %s800 = scalar_lea.vmem %s7, 16
        %v801 = vld [vmem:[%s800] sm:$0xf]
        %v802 = vld [vmem:[%s800 + $0x4] sm:$0xf]
        %v803 = vld [vmem:[%s800 + $0x8] sm:$0xf]
        %v804 = vld [vmem:[%s800 + $0xc] sm:$0xf]
        %s805 = scalar_lea.vmem %s8, 1
        %v806 = vld [vmem:[%s805] sm:$0x1]
        %v808 = vlaneseq
        %v809 = vshrl.u32 %v808, 7
        %v810 = vsub.s32 0, %v809
        %v811 = vrot.slane %v806, %v810
        %v817 = vunpack.c.l.b16 %v801
        %v818 = vunpack.c.l.b16 %v802
        %v819 = vunpack.c.l.b16 %v803
        %v820 = vunpack.c.l.b16 %v804
        %v821 = vpack.c.b16 %v818, %v817
        %v822 = vpack.c.b16 %v820, %v819
        %825 = vmatprep.subr.bf16.mxu0 0
        %826 = vmatpush1.bf16.msra.mxu0 0
        %827 = vmatprep.subr.bf16.mxu0 0
        %828 = vmatpush1.bf16.msra.mxu0 0
        %829 = vmatprep.subr.bf16.mxu0 0
        %830 = vmatpush1.bf16.msra.mxu0 0
        %831 = vmatprep.subr.bf16.mxu0 0
        %832 = vmatpush1.bf16.msra.mxu0 0
        %833 = vmatprep.subr.bf16.mxu0 0
        %834 = vmatpush1.bf16.msra.mxu0 0
        %835 = vmatprep.subr.bf16.mxu0 0
        %836 = vmatpush1.bf16.msra.mxu0 0
        %837 = vmatprep.subr.bf16.mxu0 0
        %838 = vmatpush1.bf16.msra.mxu0 %v822
        %839 = vmatprep.subr.bf16.mxu0 0
        %840 = vmatpush1.bf16.msra.mxu0 %v821
        %841 = vmatprep.subr.bf16.mxu0 0
        %842 = vmatpush2.bf16.msra.mxu0 0
        %843 = vmatprep.subr.bf16.mxu0 0
        %844 = vmatpush2.bf16.msra.mxu0 0
        %845 = vmatprep.subr.bf16.mxu0 0
        %846 = vmatpush2.bf16.msra.mxu0 0
        %847 = vmatprep.subr.bf16.mxu0 0
        %848 = vmatpush2.bf16.msra.mxu0 0
        %849 = vmatprep.subr.bf16.mxu0 0
        %850 = vmatpush2.bf16.msra.mxu0 0
        %851 = vmatprep.subr.bf16.mxu0 0
        %852 = vmatpush2.bf16.msra.mxu0 0
        %853 = vmatprep.subr.bf16.mxu0 0
        %854 = vmatpush2.bf16.msra.mxu0 0
        %855 = vmatprep.subr.bf16.mxu0 0
        %856 = vmatpush2.bf16.msra.mxu0 0
        %857 = vmatprep.mubr.bf16.mxu0 0
        %858 = vmatmul.mubr.bf16.gmra.mxu0 %v622
        %v859 = vpop.f32.mrf.mxu0
        %v860 = vadd.f32 %v811, %v859
        %v861 = vpop.f32.mrf.mxu0
        %v862 = vpop.f32.mrf.mxu0
        %v863 = vpop.f32.mrf.mxu0
        %864 = vdwg.mxu0
        %v865 = vpack.c.bf16 %v860, %v860
        %s866 = scalar_lea.vmem %s389, 2 [#allocation4]
        %867 = vst.msk [vmem:[%s866] sm:$0x3] %vm665, %v865
        %s868 = sand.u32 %s246, 1
        %s869 = scalar_lea.sflag [#allocation3], %s868
        %s870 = sand.u32 %s246, 1
        %s871 = smul.addr %s870, 4
        %s872 = scalar_lea.vmem [#allocation2], %s871
        %s873 = sand.u32 %s274, 1
        %s874 = scalar_lea.sflag [#allocation5], %s873
        %s875 = sand.u32 %s274, 1
        %s876 = smul.addr %s875, 4
        %s877 = scalar_lea.vmem [#allocation4], %s876
        // Predicated region
        $region57: #{tpu_custom_call.1} parent=55 // pred_check
          %p878 = pneg %p256
        $region58: #{tpu_custom_call.1} parent=55 // pred_check_branch
          %880 = sbr.rel (%p878) target = $region60
        $region59: #{tpu_custom_call.1} parent=55 // pred_region
          %s882 = ssub.s32 64, 64
          %883 = vsyncadd %s869, %s882
          %s884 = smul.addr %s32, 8
          %s885 = sadd.s32 %s33, %s884
          %s886 = smul.addr %s885, 32
          %s887 = scalar_lea.hbm %s9, %s886
          %s888 = sshll.u32 %s872, 4
          %s889 = int_to_ptr.vmem [resolvable:$true] %s888
          %894 = dma.vmem_to_hbm [thread:$0]  %s889, 64, %s887, %s869, 32, 128, 2
        $region60: #{tpu_custom_call.1} parent=55 // pred_fallthru
          _
        // Predicated region
        $region61: #{tpu_custom_call.1} parent=55 // pred_check
          %p895 = pneg %p284
        $region62: #{tpu_custom_call.1} parent=55 // pred_check_branch
          %897 = sbr.rel (%p895) target = $region64
        $region63: #{tpu_custom_call.1} parent=55 // pred_region
          %s899 = ssub.s32 64, 64
          %900 = vsyncadd %s874, %s899
          %s901 = smul.addr %s32, 8
          %s902 = sadd.s32 %s33, %s901
          %s903 = smul.addr %s902, 32
          %s904 = scalar_lea.hbm %s10, %s903
          %s905 = sshll.u32 %s877, 4
          %s906 = int_to_ptr.vmem [resolvable:$true] %s905
          %911 = dma.vmem_to_hbm [thread:$0]  %s906, 64, %s904, %s874, 32, 128, 2
        $region64: #{tpu_custom_call.1} parent=55 // pred_fallthru
          _
      $region56: #{tpu_custom_call.1} parent=5 // pred_fallthru
        _
      %p912 = scmp.le.s32.totalorder 2, %s23
      // Predicated region
      $region65: #{tpu_custom_call.1} parent=5 // pred_check
        %p913 = pneg %p912
      $region66: #{tpu_custom_call.1} parent=5 // pred_check_branch
        %915 = sbr.rel (%p913) target = $region68
      $region67: #{tpu_custom_call.1} parent=5 // pred_region
        %s916 = ssub.s32 %s23, 2
        // Predicated region
        $region69: #{tpu_custom_call.1} parent=67 // pred_check
          %p917 = pneg %p262
        $region70: #{tpu_custom_call.1} parent=67 // pred_check_branch
          %919 = sbr.rel (%p917) target = $region72
        $region71: #{tpu_custom_call.1} parent=67 // pred_region
          %s920 = sand.u32 %s247, 1
          %s921 = scalar_lea.sflag [#allocation3], %s920
          %s922 = sand.u32 %s247, 1
          %s923 = smul.addr %s922, 4
          %s924 = scalar_lea.vmem [#allocation2], %s923
          %925 = dma.done %s921, 64
        $region72: #{tpu_custom_call.1} parent=67 // pred_fallthru
          _
        // Predicated region
        $region73: #{tpu_custom_call.1} parent=67 // pred_check
          %p926 = pneg %p290
        $region74: #{tpu_custom_call.1} parent=67 // pred_check_branch
          %928 = sbr.rel (%p926) target = $region76
        $region75: #{tpu_custom_call.1} parent=67 // pred_region
          %s929 = sand.u32 %s275, 1
          %s930 = scalar_lea.sflag [#allocation5], %s929
          %s931 = sand.u32 %s275, 1
          %s932 = smul.addr %s931, 4
          %s933 = scalar_lea.vmem [#allocation4], %s932
          %934 = dma.done %s930, 64
        $region76: #{tpu_custom_call.1} parent=67 // pred_fallthru
          _
      $region68: #{tpu_custom_call.1} parent=5 // pred_fallthru
        _
    $region6: #{tpu_custom_call.1} parent=1 // loop_footer
      %s27 = sadd.s32 1, %s23
    $region7: #{tpu_custom_call.1} parent=1 // loop_footer_branch
      %22 = sbr.rel target = $region3
    $region8: #{tpu_custom_call.1} parent=1 // loop_exit
      _
    %935 = vsyncpa [#allocation3], 1
    %s936 = scalar_lea.sflag [#allocation3], 1
    %937 = vsyncpa %s936, 1
    %938 = vsyncpa [#allocation5], 1
    %s939 = scalar_lea.sflag [#allocation5], 1
    %940 = vsyncpa %s939, 1

</llo_original>
